<compile_context>
chip_gen: v7x
topology: tpu7x:2x2x1
jax: 0.10.0
libtpu: 0.0.40
codegen_flags: <defaults>
</compile_context>

<pallas_src>
import functools
import math

import jax
import jax.numpy as jnp
from jax import lax
from jax.experimental import pallas as pl
from jax.experimental.pallas import tpu as pltpu

_LANE = 128          # out-block row granularity when the grid is tiled
_SMALL_BATCH = 1024  # below this a single full-array block is used


def _cdiv(a, b):
    return -(-a // b)


@functools.lru_cache(maxsize=None)
def _tpu_vmem_bytes():
    try:
        return int(pltpu.get_tpu_info().vmem_capacity_bytes)
    except Exception:
        return 64 * 1024 * 1024  # assume the smallest per-core VMEM (v7x)


def _tile_plan(batch, x_itemsize):
    """Pick (TB, num_blocks, vmem_limit_bytes) for a (batch, D~31) input."""
    vmem = _tpu_vmem_bytes()
    # Lane/sublane-padded, double-buffered VMEM bytes per batch row:
    #   x  (TB, D) pads its last dim to 128 lanes -> 128 * itemsize per row, 2 buffers
    #   out (C, TB) pads its sublane dim to 8     ->   8 * 4        per row, 2 buffers
    per_row = 2 * (128 * x_itemsize) + 2 * (8 * 4)
    # Generation-aware row cap: ~16K rows if only 64 MiB/TC (v7x), ~32K on v5e/v6e.
    tb_cap = 32768 if vmem >= 100 * 1024 * 1024 else 16384
    tb_cap = min(tb_cap, max(_LANE, ((vmem // 2) // per_row) // _LANE * _LANE))

    if batch <= _SMALL_BATCH:
        tb, nblk = batch, 1
    else:
        nsteps = max(2, _cdiv(batch, tb_cap))
        if nsteps % 2:
            nsteps += 1                       # even grid -> balanced 2-TC split on v7x
        tb = min(tb_cap, _cdiv(_cdiv(batch, nsteps), _LANE) * _LANE)
        tb = max(tb, _LANE)
        nblk = _cdiv(batch, tb)

    used = tb * per_row + (8 << 20)           # + params / compiler-scratch headroom
    vmem_limit = min(max(used, 32 << 20), int(vmem * 0.75))
    return tb, nblk, vmem_limit


def _mclr_kernel(x_ref, w_ref, b_ref, o_ref):
    # x_ref: (TB, D) any float dtype, w_ref: (C, D) f32 (nn.Linear layout),
    # b_ref: (C, 1) f32, o_ref: (C, TB) f32 (transposed, lane-dense output).
    x = x_ref[...].astype(jnp.float32)   # bf16 callers halve HBM reads; upcast here
    w = w_ref[...].astype(jnp.float32)
    b = b_ref[...].astype(jnp.float32)

    # logits^T (C, TB): contract the feature axis of both operands (the q @ k^T MXU
    # pattern, no in-kernel transpose of the streamed x).  f32 accumulate on the MXU.
    logits_t = lax.dot_general(
        w, x, (((1,), (1,)), ((), ())), preferred_element_type=jnp.float32) + b

    num_classes = logits_t.shape[0]
    if num_classes == 2:
        # Closed-form 2-class log_softmax on a lane-dense (1, TB) vector:
        #   lp0 = -softplus(d), lp1 = d - softplus(d), d = z1 - z0,
        # with softplus in the overflow-safe form max(d, 0) + log(1 + exp(-|d|)).
        d = logits_t[1:2, :] - logits_t[0:1, :]
        sp = jnp.maximum(d, 0.0) + jnp.log(1.0 + jnp.exp(-jnp.abs(d)))
        out = jnp.concatenate([-sp, d - sp], axis=0)
    else:
        # General-C fallback: stable log_softmax over the class (sublane) axis,
        # still lane-dense along the batch axis.
        m = jnp.max(logits_t, axis=0, keepdims=True)
        shifted = logits_t - m
        lse = jnp.log(jnp.sum(jnp.exp(shifted), axis=0, keepdims=True))
        out = shifted - lse

    o_ref[...] = out.astype(o_ref.dtype)


@jax.jit
def mclr_logistic_forward(x, w, b):
    """Forward pass of Mclr_Logistic.

    x: (B, ...) float array, flattened to (B, D) row-major (torch.flatten(x, 1)).
       bf16 inputs are supported and recommended (halves the dominant HBM stream);
       the kernel upcasts to f32 before the matmul.
    w: (C, D) float32 -- the nn.Linear weight in its native (out_features, in) layout.
    b: (C,) float32.
    Returns (B, C) float32 log-probabilities.
    """
    batch = x.shape[0]
    x2d = x.reshape(batch, -1)
    feat = x2d.shape[1]
    ncls = w.shape[0]
    b2d = b.reshape(ncls, 1)

    tb, nblk, vmem_limit = _tile_plan(batch, jnp.dtype(x2d.dtype).itemsize)

    out_t = pl.pallas_call(
        _mclr_kernel,
        out_shape=jax.ShapeDtypeStruct((ncls, batch), jnp.float32),
        grid=(nblk,),
        in_specs=[
            pl.BlockSpec((tb, feat), lambda i: (i, 0)),    # streamed, double-buffered
            pl.BlockSpec((ncls, feat), lambda i: (0, 0)),  # resident across the grid
            pl.BlockSpec((ncls, 1), lambda i: (0, 0)),     # resident across the grid
        ],
        # Transposed output: batch on the lane axis -> lane-dense stores.  The final
        # block may be ragged; Pallas masks the out-of-range columns (no jnp.pad copy).
        out_specs=pl.BlockSpec((ncls, tb), lambda i: (0, i)),
        compiler_params=pltpu.CompilerParams(
            dimension_semantics=("parallel",),   # v7x: shard the batch over the 2 TCs
            vmem_limit_bytes=vmem_limit,
        ),
    )(x2d, w, b2d)

    # Tiny (8 B/row) layout fix-up back to the PyTorch (B, C) convention.
    return out_t.T


if __name__ == "__main__":
    input_dim = 1 * 31
    num_classes = 2

    key = jax.random.PRNGKey(0)
    kx, kw, kb, kx2 = jax.random.split(key, 4)

    # Deterministic init mimicking nn.Linear's U(-1/sqrt(fan_in), 1/sqrt(fan_in)),
    # prepared ONCE in f32 and in the native (out, in) layout -- no per-call prep.
    bound = 1.0 / math.sqrt(input_dim)
    w = jax.random.uniform(kw, (num_classes, input_dim), jnp.float32, -bound, bound)
    b = jax.random.uniform(kb, (num_classes,), jnp.float32, -bound, bound)

    def ref_forward(x):
        xf = x.reshape(x.shape[0], -1).astype(jnp.float32)
        return jax.nn.log_softmax(xf @ w.T + b, axis=1)

    # Small case: single full-array block; (B, 1, 31) exercises torch.flatten(x, 1).
    x_small = jax.random.normal(kx, (8, 1, input_dim), jnp.float32)
    out_small = jax.block_until_ready(mclr_logistic_forward(x_small, w, b))
    assert out_small.shape == (8, num_classes)
    assert jnp.allclose(out_small, ref_forward(x_small), atol=1e-4, rtol=1e-4)

    # Tiled path: grid of 2 "parallel" steps with a ragged (masked) final block,
    # bf16 x exercising the half-HBM-traffic input path.
    x_big = jax.random.normal(kx2, (2500, 1, input_dim), jnp.float32).astype(jnp.bfloat16)
    out_big = jax.block_until_ready(mclr_logistic_forward(x_big, w, b))
    assert out_big.shape == (2500, num_classes)
    assert jnp.allclose(out_big, ref_forward(x_big), atol=1e-4, rtol=1e-4)

    print("KERNEL_OK")
</pallas_src>

<mosaic_0001>
module attributes {stable_mosaic.version = 11 : i64} {
  func.func @_mclr_kernel(%arg0: i32, %arg1: memref<8x31xf32, #tpu.memory_space<vmem>>, %arg2: memref<2x31xf32, #tpu.memory_space<vmem>>, %arg3: memref<2x1xf32, #tpu.memory_space<vmem>>, %arg4: memref<2x8xf32, #tpu.memory_space<vmem>>) attributes {dimension_semantics = [#tpu.dimension_semantics<parallel>], iteration_bounds = array<i64: 1>, scalar_prefetch = 0 : i64, scratch_operands = 0 : i64, tpu.core_type = #tpu.core_type<tc>, window_params = [{transform_indices = @transform_0, window_bounds = array<i64: 8, 31>}, {pipeline_mode = #tpu.pipeline_mode<synchronous>, transform_indices = @transform_1, window_bounds = array<i64: 2, 31>}, {pipeline_mode = #tpu.pipeline_mode<synchronous>, transform_indices = @transform_2, window_bounds = array<i64: 2, 1>}, {transform_indices = @transform_3, window_bounds = array<i64: 2, 8>}]} {
    %c0 = arith.constant 0 : index
    %c0_0 = arith.constant 0 : index
    %0 = vector.load %arg1[%c0, %c0_0] : memref<8x31xf32, #tpu.memory_space<vmem>>, vector<8x31xf32>
    %c0_1 = arith.constant 0 : index
    %c0_2 = arith.constant 0 : index
    %1 = vector.load %arg2[%c0_1, %c0_2] : memref<2x31xf32, #tpu.memory_space<vmem>>, vector<2x31xf32>
    %c0_3 = arith.constant 0 : index
    %c0_4 = arith.constant 0 : index
    %2 = vector.load %arg3[%c0_3, %c0_4] : memref<2x1xf32, #tpu.memory_space<vmem>>, vector<2x1xf32>
    %cst = arith.constant dense<0.000000e+00> : vector<2x8xf32>
    %3 = tpu.matmul %1, %0, %cst {dimension_numbers = #tpu.dot_dimension_numbers<[1], [1], [0], [0], [0, 0, 1, 0], [], []>} : vector<2x31xf32>, vector<8x31xf32>, vector<2x8xf32> -> vector<2x8xf32>
    %4 = vector.broadcast %2 : vector<2x1xf32> to vector<2x8xf32>
    %5 = arith.addf %3, %4 : vector<2x8xf32>
    %6 = vector.extract_strided_slice %5 {offsets = [1, 0], sizes = [1, 8], strides = [1, 1]} : vector<2x8xf32> to vector<1x8xf32>
    %7 = vector.extract_strided_slice %5 {offsets = [0, 0], sizes = [1, 8], strides = [1, 1]} : vector<2x8xf32> to vector<1x8xf32>
    %8 = arith.subf %6, %7 : vector<1x8xf32>
    %cst_5 = arith.constant 0.000000e+00 : f32
    %9 = vector.broadcast %cst_5 : f32 to vector<1x8xf32>
    %10 = arith.maximumf %8, %9 : vector<1x8xf32>
    %11 = math.absf %8 : vector<1x8xf32>
    %cst_6 = arith.constant 0.000000e+00 : f32
    %12 = vector.broadcast %cst_6 : f32 to vector<1x8xf32>
    %13 = arith.subf %12, %11 : vector<1x8xf32>
    %14 = math.exp %13 : vector<1x8xf32>
    %cst_7 = arith.constant 1.000000e+00 : f32
    %15 = vector.broadcast %cst_7 : f32 to vector<1x8xf32>
    %16 = arith.addf %15, %14 : vector<1x8xf32>
    %17 = math.log %16 : vector<1x8xf32>
    %18 = arith.addf %10, %17 : vector<1x8xf32>
    %cst_8 = arith.constant 0.000000e+00 : f32
    %19 = vector.broadcast %cst_8 : f32 to vector<1x8xf32>
    %20 = arith.subf %19, %18 : vector<1x8xf32>
    %21 = arith.subf %8, %18 : vector<1x8xf32>
    %22 = tpu.concatenate %20, %21 in 0 : vector<1x8xf32>, vector<1x8xf32> -> vector<2x8xf32>
    %c0_9 = arith.constant 0 : index
    %c0_10 = arith.constant 0 : index
    %23 = vector.load %arg4[%c0_9, %c0_10] : memref<2x8xf32, #tpu.memory_space<vmem>>, vector<2x8xf32>
    tpu.vector_store %arg4[%c0_9, %c0_10], %22 {strides = array<i32>} : memref<2x8xf32, #tpu.memory_space<vmem>>, vector<2x8xf32>,
    return
  }
  func.func @transform_0(%arg0: i32) -> (i32, i32) {
    %c0_i32 = arith.constant 0 : i32
    %c0_i32_0 = arith.constant 0 : i32
    return %arg0, %c0_i32 : i32, i32
  }
  func.func @transform_1(%arg0: i32) -> (i32, i32) {
    %c0_i32 = arith.constant 0 : i32
    %c0_i32_0 = arith.constant 0 : i32
    %c0_i32_1 = arith.constant 0 : i32
    return %c0_i32, %c0_i32_0 : i32, i32
  }
  func.func @transform_2(%arg0: i32) -> (i32, i32) {
    %c0_i32 = arith.constant 0 : i32
    %c0_i32_0 = arith.constant 0 : i32
    %c0_i32_1 = arith.constant 0 : i32
    return %c0_i32, %c0_i32_0 : i32, i32
  }
  func.func @transform_3(%arg0: i32) -> (i32, i32) {
    %c0_i32 = arith.constant 0 : i32
    %c0_i32_0 = arith.constant 0 : i32
    return %c0_i32, %arg0 : i32, i32
  }
}

</mosaic_0001>

<llo_original>
// kernel: mclr_logistic_forward.1
$region0: #{mclr_logistic_forward.1}
  #allocation0 [shape = 'u32[]', space=smem, size = 0x4, offset = 0x4, fixed_abs, tag = 'smem constant byte address 0x4 - core index']
  #allocation1 [shape = 'u32[144,128]{1,0:T(1,128)}', space=vmem, size = 0x12000, scoped, tag = 'internal scratch']
  %s0 = inlined_call_operand.vmem [shape: f32[8,31], index: 0, kind: input, shape index: {}]
  %s1 = inlined_call_operand.vmem [shape: f32[2,31], index: 1, kind: input, shape index: {}]
  %s2 = inlined_call_operand.vmem [shape: f32[2,1], index: 2, kind: input, shape index: {}]
  %s3 = inlined_call_operand.hbm [shape: f32[2,8], index: 3, kind: output, shape index: {}]
  %s4 = sld [smem:[#allocation0]]
  $region22: #{mclr_logistic_forward.1} parent=0
    _
  %s6 = ssub.s32 1, %s4
  %s7 = scalar_select 0, %s6, %s4
  $region1: #{mclr_logistic_forward.1} parent=0
    #allocation2 [shape = 'u8[1024]{0}', space=vmem, size = 0x400, scoped, tag = 'output window, operand 0, single buffered']
    #allocation3 [shape = 's32[1]{0}', space=sflag, size = 0x4, scoped, tag = 'scoped memory for mclr_logistic_forward.1']
    %8 = vsyncpa [#allocation3], 0
    // Predicated region
    $region2: #{mclr_logistic_forward.1} parent=1 // pred_check
      _
    $region3: #{mclr_logistic_forward.1} parent=1 // pred_check_branch
      %10 = sbr.rel (0) target = $region5
    $region4: #{mclr_logistic_forward.1} parent=1 // pred_region
      _
    $region5: #{mclr_logistic_forward.1} parent=1 // pred_fallthru
      _
    // Predicated region
    $region6: #{mclr_logistic_forward.1} parent=1 // pred_check
      _
    $region7: #{mclr_logistic_forward.1} parent=1 // pred_check_branch
      %12 = sbr.rel (0) target = $region9
    $region8: #{mclr_logistic_forward.1} parent=1 // pred_region
      _
    $region9: #{mclr_logistic_forward.1} parent=1 // pred_fallthru
      _
    // Predicated region
    $region10: #{mclr_logistic_forward.1} parent=1 // pred_check
      _
    $region11: #{mclr_logistic_forward.1} parent=1 // pred_check_branch
      %14 = sbr.rel (0) target = $region13
    $region12: #{mclr_logistic_forward.1} parent=1 // pred_region
      _
    $region13: #{mclr_logistic_forward.1} parent=1 // pred_fallthru
      _
    %v15 = vld [vmem:[%s0] sm:$0xff]
    %v16 = vld [vmem:[%s1] sm:$0x3]
    %v17 = vld [vmem:[%s2] sm:$0x3]
    %19 = vset.pattern.permute.xlu0 0
    %20 = vperm.xlu0 %19, %v17
    %v21 = vpop.permute.xlu0 %20
    %vm23 = vcmask 252928
    %v25 = vsel %vm23, %v16, 0
    %v28 = vsel %vm23, %v15, 0
    %30 = vmatprep.subr.mxu0 0.0
    %31 = vmatpush1.xpose.msra.mxu0 %v28
    %32 = vmatprep.subr.mxu0 0.0
    %33 = vmatpush1.xpose.msra.mxu0 0.0
    %34 = vmatprep.subr.mxu0 0.0
    %35 = vmatpush1.xpose.msra.mxu0 0.0
    %36 = vmatprep.subr.mxu0 0.0
    %37 = vmatpush1.xpose.msra.mxu0 0.0
    %38 = vmatprep.subr.mxu0 0.0
    %39 = vmatpush1.xpose.msra.mxu0 0.0
    %40 = vmatprep.subr.mxu0 0.0
    %41 = vmatpush1.xpose.msra.mxu0 0.0
    %42 = vmatprep.subr.mxu0 0.0
    %43 = vmatpush1.xpose.msra.mxu0 0.0
    %44 = vmatprep.subr.mxu0 0.0
    %45 = vmatpush1.xpose.msra.mxu0 0.0
    %46 = vmatprep.subr.mxu0 0.0
    %47 = vmatpush1.xpose.msra.mxu0 0.0
    %48 = vmatprep.subr.mxu0 0.0
    %49 = vmatpush1.xpose.msra.mxu0 0.0
    %50 = vmatprep.subr.mxu0 0.0
    %51 = vmatpush1.xpose.msra.mxu0 0.0
    %52 = vmatprep.subr.mxu0 0.0
    %53 = vmatpush1.xpose.msra.mxu0 0.0
    %54 = vmatprep.subr.mxu0 0.0
    %55 = vmatpush1.xpose.msra.mxu0 0.0
    %56 = vmatprep.subr.mxu0 0.0
    %57 = vmatpush1.xpose.msra.mxu0 0.0
    %58 = vmatprep.subr.mxu0 0.0
    %59 = vmatpush1.xpose.msra.mxu0 0.0
    %60 = vmatprep.subr.mxu0 0.0
    %61 = vmatpush1.xpose.msra.mxu0 0.0
    %62 = vmatprep.subr.mxu0 0.0
    %63 = vmatpush1.xpose.msra.mxu0 0.0
    %64 = vmatprep.subr.mxu0 0.0
    %65 = vmatpush1.xpose.msra.mxu0 0.0
    %66 = vmatprep.subr.mxu0 0.0
    %67 = vmatpush1.xpose.msra.mxu0 0.0
    %68 = vmatprep.subr.mxu0 0.0
    %69 = vmatpush1.xpose.msra.mxu0 0.0
    %70 = vmatprep.subr.mxu0 0.0
    %71 = vmatpush1.xpose.msra.mxu0 0.0
    %72 = vmatprep.subr.mxu0 0.0
    %73 = vmatpush1.xpose.msra.mxu0 0.0
    %74 = vmatprep.subr.mxu0 0.0
    %75 = vmatpush1.xpose.msra.mxu0 0.0
    %76 = vmatprep.subr.mxu0 0.0
    %77 = vmatpush1.xpose.msra.mxu0 0.0
    %78 = vmatprep.subr.mxu0 0.0
    %79 = vmatpush1.xpose.msra.mxu0 0.0
    %80 = vmatprep.subr.mxu0 0.0
    %81 = vmatpush1.xpose.msra.mxu0 0.0
    %82 = vmatprep.subr.mxu0 0.0
    %83 = vmatpush1.xpose.msra.mxu0 0.0
    %84 = vmatprep.subr.mxu0 0.0
    %85 = vmatpush1.xpose.msra.mxu0 0.0
    %86 = vmatprep.subr.mxu0 0.0
    %87 = vmatpush1.xpose.msra.mxu0 0.0
    %88 = vmatprep.subr.mxu0 0.0
    %89 = vmatpush1.xpose.msra.mxu0 0.0
    %90 = vmatprep.subr.mxu0 0.0
    %91 = vmatpush1.xpose.msra.mxu0 0.0
    %92 = vmatprep.subr.mxu0 0.0
    %93 = vmatpush1.xpose.msra.mxu0 0.0
    %94 = vmatprep.mubr.f32.mxu0 0.0
    %95 = vmatmul.mubr.f32.gmra.mrb[0].mxu0 %v25
    %v96 = vpop.f32.mrb[0].mxu0
    %v97 = vadd.f32 %v21, %v96
    %v98 = vpop.f32.mrb[0].mxu0
    %99 = vdwg.mxu0
    %v101 = vrot.slane %v97, 7
    %v103 = vsub.f32 %v97, %v101
    %v104 = vmax.f32 %v103, 0.0
    %v105 = vand.u32 2147483647, %v103
    %v106 = vsub.f32 0.0, %v105
    %v107 = vmul.f32 %v106, 1.442695
    %v108 = vpow.pop %v107
    %v109 = vadd.f32 %v108, 1.0
    %v110 = vlog2.pop %v109
    %v111 = vmul.f32 %v110, 0.6931472
    %v112 = vadd.f32 %v104, %v111
    %v113 = vsub.f32 0.0, %v112
    %v114 = vsub.f32 %v103, %v112
    %v116 = vrot.slane %v113, 1
    %vm118 = vcmask 1040384
    %v119 = vsel %vm118, %v116, %v114
    %vm120 = vcmask 58368
    %121 = vst.msk [vmem:[#allocation2] sm:$0x3] %vm120, %v119
    // Predicated region
    $region14: #{mclr_logistic_forward.1} parent=1 // pred_check
      _
    $region15: #{mclr_logistic_forward.1} parent=1 // pred_check_branch
      %123 = sbr.rel (0) target = $region17
    $region16: #{mclr_logistic_forward.1} parent=1 // pred_region
      %s125 = ssub.s32 32, 32
      %126 = vsyncadd [#allocation3], %s125
      %s128 = sshll.u32 [#allocation2], 4
      %s129 = int_to_ptr.vmem [resolvable:$true] %s128
      %131 = dma.vmem_to_hbm [thread:$0]  %s129, 32, %s3, [#allocation3]
    $region17: #{mclr_logistic_forward.1} parent=1 // pred_fallthru
      _
    // Predicated region
    $region18: #{mclr_logistic_forward.1} parent=1 // pred_check
      _
    $region19: #{mclr_logistic_forward.1} parent=1 // pred_check_branch
      %133 = sbr.rel (0) target = $region21
    $region20: #{mclr_logistic_forward.1} parent=1 // pred_region
      %134 = dma.done [#allocation3], 32
    $region21: #{mclr_logistic_forward.1} parent=1 // pred_fallthru
      _
    %135 = vsyncpa [#allocation3], 1

</llo_original>
